<compile_context>
chip_gen: v7x
topology: tpu7x:2x2x1
jax: 0.10.0
libtpu: 0.0.40
codegen_flags: <defaults>
</compile_context>

<pallas_src>
import jax
import jax.numpy as jnp
from jax.experimental import pallas as pl
from jax.experimental.pallas import tpu as pltpu


def _round_up(x, m):
    return ((x + m - 1) // m) * m


def _pick_row_tile(M, H, tm):
    """Choose a lane-dense (multiple of 128) row tile."""
    m128 = _round_up(M, 128)
    if tm is None:
        # Budget live VMEM: z1/h intermediates ~8*H*TM bytes plus ~40*TM for
        # the double-buffered x/out tiles.  Keep it <= ~16 MiB so it is safe
        # under the 32 MiB vmem_limit below on every generation (v5e default
        # scoped 16 MiB, v7x 64 MiB physical), and cap at 32768 rows where
        # grid-step overhead is already negligible.
        budget = 16 << 20
        tm = max(128, min(32768, budget // (8 * H + 40)))
    tm = _round_up(min(tm, m128), 128)
    # Keep >=2 grid steps when the problem allows it so v7x's two TensorCores
    # are both used (grid axis is marked "parallel"); no effect on v5e/v6e.
    if tm >= m128 and m128 >= 256:
        tm = _round_up(m128 // 2, 128)
    return tm


def _black_box_kernel(xT_ref, w1_ref, b1_ref, w23_ref, b23_ref, o_ref):
    # xT_ref:  (2, TM)  feature-major row tile of the input (first 2 features)
    # w1_ref:  (H, 2)   0.5 * W1 of Linear(2, H)    (sigmoid 0.5 folded in)
    # b1_ref:  (H, 1)   0.5 * b1 column
    # w23_ref: (3, H)   0.5 * (w3 @ w2)             (layers 2+3 fused)
    # b23_ref: (3, 1)   w3*b2 + 0.5*(w3@w2) @ ones  (sigmoid +0.5 folded in)
    # o_ref:   (3, TM)  feature-major output tile (lane-dense)
    x0 = xT_ref[0:1, :]            # (1, TM)
    x1 = xT_ref[1:2, :]            # (1, TM)

    # Layer 1 on the VPU (K=2 contraction as broadcast mul/add): (H, TM).
    z1 = w1_ref[:, 0:1] * x0 + w1_ref[:, 1:2] * x1 + b1_ref[...]
    # Sigmoid constants are pre-folded into the weights -> plain tanh (EUP).
    h = jnp.tanh(z1)

    # Fused layers 2+3 on the MXU: (3, H) @ (H, TM) + (3, 1) -> (3, TM).
    out = jnp.dot(w23_ref[...], h, preferred_element_type=jnp.float32)
    o_ref[...] = (out + b23_ref[...]).astype(o_ref.dtype)


def _black_box_forward_impl(c_prev, params, tm=None):
    """c_prev: [B, S, D] (D >= 2). Returns [B, S, 3] float32."""
    w1, b1, w2, b2, w3 = params  # shapes: (H,2), (H,), (1,H), (1,), (3,1)
    B, S, D = c_prev.shape
    assert D >= 2
    H = w1.shape[0]
    M = B * S

    tm_eff = _pick_row_tile(M, H, tm)
    M_pad = _round_up(M, tm_eff)
    grid = (M_pad // tm_eff,)

    # Host-side weight folding (tiny, done once per call under jit):
    #   sigmoid(z) = 0.5*tanh(0.5*z) + 0.5
    #   out = (w3@w2) @ sigmoid(W1 x + b1) + w3*b2
    #       = W23' @ tanh(W1' x + b1') + b23'
    w1p = 0.5 * w1.astype(jnp.float32)                               # (H, 2)
    b1p = 0.5 * b1.astype(jnp.float32).reshape(H, 1)                 # (H, 1)
    w23p = 0.5 * (w3.astype(jnp.float32) @ w2.astype(jnp.float32))   # (3, H)
    b23p = (w3.astype(jnp.float32) * b2.astype(jnp.float32)).reshape(3, 1) \
        + jnp.sum(w23p, axis=1, keepdims=True)                       # (3, 1)

    # Layout glue (fused by XLA under jit into one producer copy):
    # slice first 2 features, flatten rows, go feature-major, zero-pad rows.
    xT = c_prev[:, :, :2].reshape(M, 2).astype(jnp.float32).T        # (2, M)
    xT = jnp.pad(xT, ((0, 0), (0, M_pad - M)))                       # (2, M_pad)

    outT = pl.pallas_call(
        _black_box_kernel,
        out_shape=jax.ShapeDtypeStruct((3, M_pad), jnp.float32),
        grid_spec=pltpu.PrefetchScalarGridSpec(
            num_scalar_prefetch=0,
            grid=grid,
            in_specs=[
                pl.BlockSpec((2, tm_eff), lambda i: (0, i)),   # x^T tile
                pl.BlockSpec((H, 2), lambda i: (0, 0)),        # 0.5*W1
                pl.BlockSpec((H, 1), lambda i: (0, 0)),        # 0.5*b1 column
                pl.BlockSpec((3, H), lambda i: (0, 0)),        # fused W23'
                pl.BlockSpec((3, 1), lambda i: (0, 0)),        # fused b23' col
            ],
            out_specs=pl.BlockSpec((3, tm_eff), lambda i: (0, i)),
        ),
        compiler_params=pltpu.CompilerParams(
            dimension_semantics=("parallel",),
            vmem_limit_bytes=32 << 20,
        ),
    )(xT, w1p, b1p, w23p, b23p)

    # Drop row padding, back to row-major, restore [B, S, 3].
    return outT[:, :M].T.reshape(B, S, 3)


black_box_forward = jax.jit(_black_box_forward_impl, static_argnames=("tm",))


def init_params(key, hidden_neurons):
    """Deterministic init mirroring torch.nn.Linear parameter shapes."""
    k1, k2, k3, k4, k5 = jax.random.split(key, 5)
    w1 = jax.random.normal(k1, (hidden_neurons, 2), dtype=jnp.float32) * 0.5
    b1 = jax.random.normal(k2, (hidden_neurons,), dtype=jnp.float32) * 0.1
    w2 = jax.random.normal(k3, (1, hidden_neurons), dtype=jnp.float32) * 0.5
    b2 = jax.random.normal(k4, (1,), dtype=jnp.float32) * 0.1
    w3 = jax.random.normal(k5, (3, 1), dtype=jnp.float32) * 0.5
    return (w1, b1, w2, b2, w3)


def reference_forward(c_prev, params):
    w1, b1, w2, b2, w3 = params
    x2 = c_prev[:, :, :2].astype(jnp.float32)
    h = jax.nn.sigmoid(x2 @ w1.T + b1)
    z2 = h @ w2.T + b2
    return z2 @ w3.T


if __name__ == "__main__":
    hidden_neurons = 32

    key = jax.random.PRNGKey(0)
    k_x, k_p, k_x2 = jax.random.split(key, 3)
    params = init_params(k_p, hidden_neurons)

    # Small canonical case (single tile).
    B, S, D = 2, 8, 4  # c_prev has >=2 features in its last dim
    c_prev = jax.random.normal(k_x, (B, S, D), dtype=jnp.float32)
    out = jax.block_until_ready(black_box_forward(c_prev, params))
    ref = reference_forward(c_prev, params)
    assert out.shape == (B, S, 3), out.shape
    assert jnp.allclose(out, ref, atol=1e-5, rtol=1e-4), "mismatch vs reference"

    # Larger, non-divisible case: exercises row padding and a >=2-step grid.
    B2, S2 = 4, 1000
    c_prev2 = jax.random.normal(k_x2, (B2, S2, D), dtype=jnp.float32)
    out2 = jax.block_until_ready(black_box_forward(c_prev2, params))
    ref2 = reference_forward(c_prev2, params)
    assert out2.shape == (B2, S2, 3), out2.shape
    assert jnp.allclose(out2, ref2, atol=1e-5, rtol=1e-4), "mismatch (tiled)"

    print("KERNEL_OK")
</pallas_src>

<mosaic_0001>
module attributes {stable_mosaic.version = 11 : i64} {
  func.func @_black_box_kernel(%arg0: i32, %arg1: memref<2x128xf32, #tpu.memory_space<vmem>>, %arg2: memref<32x2xf32, #tpu.memory_space<vmem>>, %arg3: memref<32x1xf32, #tpu.memory_space<vmem>>, %arg4: memref<3x32xf32, #tpu.memory_space<vmem>>, %arg5: memref<3x1xf32, #tpu.memory_space<vmem>>, %arg6: memref<3x128xf32, #tpu.memory_space<vmem>>) attributes {dimension_semantics = [#tpu.dimension_semantics<parallel>], iteration_bounds = array<i64: 1>, scalar_prefetch = 0 : i64, scratch_operands = 0 : i64, tpu.core_type = #tpu.core_type<tc>, window_params = [{transform_indices = @transform_0, window_bounds = array<i64: 2, 128>}, {pipeline_mode = #tpu.pipeline_mode<synchronous>, transform_indices = @transform_1, window_bounds = array<i64: 32, 2>}, {pipeline_mode = #tpu.pipeline_mode<synchronous>, transform_indices = @transform_2, window_bounds = array<i64: 32, 1>}, {pipeline_mode = #tpu.pipeline_mode<synchronous>, transform_indices = @transform_3, window_bounds = array<i64: 3, 32>}, {pipeline_mode = #tpu.pipeline_mode<synchronous>, transform_indices = @transform_4, window_bounds = array<i64: 3, 1>}, {transform_indices = @transform_5, window_bounds = array<i64: 3, 128>}]} {
    %c0 = arith.constant 0 : index
    %c0_0 = arith.constant 0 : index
    %0 = vector.load %arg1[%c0, %c0_0] : memref<2x128xf32, #tpu.memory_space<vmem>>, vector<1x128xf32>
    %c1 = arith.constant 1 : index
    %c0_1 = arith.constant 0 : index
    %1 = vector.load %arg1[%c1, %c0_1] : memref<2x128xf32, #tpu.memory_space<vmem>>, vector<1x128xf32>
    %c0_2 = arith.constant 0 : index
    %c0_3 = arith.constant 0 : index
    %2 = vector.load %arg2[%c0_2, %c0_3] : memref<32x2xf32, #tpu.memory_space<vmem>>, vector<32x1xf32>
    %3 = vector.broadcast %2 : vector<32x1xf32> to vector<32x128xf32>
    %4 = vector.broadcast %0 : vector<1x128xf32> to vector<32x128xf32>
    %5 = arith.mulf %3, %4 : vector<32x128xf32>
    %c0_4 = arith.constant 0 : index
    %c1_5 = arith.constant 1 : index
    %6 = vector.load %arg2[%c0_4, %c1_5] : memref<32x2xf32, #tpu.memory_space<vmem>>, vector<32x1xf32>
    %7 = vector.broadcast %6 : vector<32x1xf32> to vector<32x128xf32>
    %8 = vector.broadcast %1 : vector<1x128xf32> to vector<32x128xf32>
    %9 = arith.mulf %7, %8 : vector<32x128xf32>
    %10 = arith.addf %5, %9 : vector<32x128xf32>
    %c0_6 = arith.constant 0 : index
    %c0_7 = arith.constant 0 : index
    %11 = vector.load %arg3[%c0_6, %c0_7] : memref<32x1xf32, #tpu.memory_space<vmem>>, vector<32x1xf32>
    %12 = vector.broadcast %11 : vector<32x1xf32> to vector<32x128xf32>
    %13 = arith.addf %10, %12 : vector<32x128xf32>
    %14 = math.tanh %13 : vector<32x128xf32>
    %c0_8 = arith.constant 0 : index
    %c0_9 = arith.constant 0 : index
    %15 = vector.load %arg4[%c0_8, %c0_9] : memref<3x32xf32, #tpu.memory_space<vmem>>, vector<3x32xf32>
    %cst = arith.constant dense<0.000000e+00> : vector<3x128xf32>
    %16 = tpu.matmul %15, %14, %cst {dimension_numbers = #tpu.dot_dimension_numbers<[1], [0], [0], [1], [0, 0, 1, 1], [], []>} : vector<3x32xf32>, vector<32x128xf32>, vector<3x128xf32> -> vector<3x128xf32>
    %c0_10 = arith.constant 0 : index
    %c0_11 = arith.constant 0 : index
    %17 = vector.load %arg5[%c0_10, %c0_11] : memref<3x1xf32, #tpu.memory_space<vmem>>, vector<3x1xf32>
    %18 = vector.broadcast %17 : vector<3x1xf32> to vector<3x128xf32>
    %19 = arith.addf %16, %18 : vector<3x128xf32>
    %c0_12 = arith.constant 0 : index
    %c0_13 = arith.constant 0 : index
    %20 = vector.load %arg6[%c0_12, %c0_13] : memref<3x128xf32, #tpu.memory_space<vmem>>, vector<3x128xf32>
    tpu.vector_store %arg6[%c0_12, %c0_13], %19 {strides = array<i32>} : memref<3x128xf32, #tpu.memory_space<vmem>>, vector<3x128xf32>,
    return
  }
  func.func @transform_0(%arg0: i32) -> (i32, i32) {
    %c0_i32 = arith.constant 0 : i32
    %c0_i32_0 = arith.constant 0 : i32
    return %c0_i32, %arg0 : i32, i32
  }
  func.func @transform_1(%arg0: i32) -> (i32, i32) {
    %c0_i32 = arith.constant 0 : i32
    %c0_i32_0 = arith.constant 0 : i32
    %c0_i32_1 = arith.constant 0 : i32
    return %c0_i32, %c0_i32_0 : i32, i32
  }
  func.func @transform_2(%arg0: i32) -> (i32, i32) {
    %c0_i32 = arith.constant 0 : i32
    %c0_i32_0 = arith.constant 0 : i32
    %c0_i32_1 = arith.constant 0 : i32
    return %c0_i32, %c0_i32_0 : i32, i32
  }
  func.func @transform_3(%arg0: i32) -> (i32, i32) {
    %c0_i32 = arith.constant 0 : i32
    %c0_i32_0 = arith.constant 0 : i32
    %c0_i32_1 = arith.constant 0 : i32
    return %c0_i32, %c0_i32_0 : i32, i32
  }
  func.func @transform_4(%arg0: i32) -> (i32, i32) {
    %c0_i32 = arith.constant 0 : i32
    %c0_i32_0 = arith.constant 0 : i32
    %c0_i32_1 = arith.constant 0 : i32
    return %c0_i32, %c0_i32_0 : i32, i32
  }
  func.func @transform_5(%arg0: i32) -> (i32, i32) {
    %c0_i32 = arith.constant 0 : i32
    %c0_i32_0 = arith.constant 0 : i32
    return %c0_i32, %arg0 : i32, i32
  }
}

</mosaic_0001>

<llo_original>
// kernel: _black_box_forward_impl.1
$region0: #{_black_box_forward_impl.1}
  #allocation0 [shape = 'u32[]', space=smem, size = 0x4, offset = 0x4, fixed_abs, tag = 'smem constant byte address 0x4 - core index']
  #allocation1 [shape = 'u32[144,128]{1,0:T(1,128)}', space=vmem, size = 0x12000, scoped, tag = 'internal scratch']
  %s0 = inlined_call_operand.vmem [shape: f32[2,128], index: 0, kind: input, shape index: {}]
  %s1 = inlined_call_operand.vmem [shape: f32[32,2], index: 1, kind: input, shape index: {}]
  %s2 = inlined_call_operand.vmem [shape: f32[32,1], index: 2, kind: input, shape index: {}]
  %s3 = inlined_call_operand.vmem [shape: f32[3,32], index: 3, kind: input, shape index: {}]
  %s4 = inlined_call_operand.vmem [shape: f32[3,1], index: 4, kind: input, shape index: {}]
  %s5 = inlined_call_operand.vmem [shape: f32[3,128], index: 5, kind: output, shape index: {}]
  %s6 = sld [smem:[#allocation0]]
  $region30: #{_black_box_forward_impl.1} parent=0
    _
  %s8 = ssub.s32 1, %s6
  %s9 = scalar_select 0, %s8, %s6
  // Predicated region
  $region2: #{_black_box_forward_impl.1} parent=0 // pred_check
    _
  $region3: #{_black_box_forward_impl.1} parent=0 // pred_check_branch
    %11 = sbr.rel (0) target = $region5
  $region4: #{_black_box_forward_impl.1} parent=0 // pred_region
    _
  $region5: #{_black_box_forward_impl.1} parent=0 // pred_fallthru
    _
  // Predicated region
  $region6: #{_black_box_forward_impl.1} parent=0 // pred_check
    _
  $region7: #{_black_box_forward_impl.1} parent=0 // pred_check_branch
    %13 = sbr.rel (0) target = $region9
  $region8: #{_black_box_forward_impl.1} parent=0 // pred_region
    _
  $region9: #{_black_box_forward_impl.1} parent=0 // pred_fallthru
    _
  // Predicated region
  $region10: #{_black_box_forward_impl.1} parent=0 // pred_check
    _
  $region11: #{_black_box_forward_impl.1} parent=0 // pred_check_branch
    %15 = sbr.rel (0) target = $region13
  $region12: #{_black_box_forward_impl.1} parent=0 // pred_region
    _
  $region13: #{_black_box_forward_impl.1} parent=0 // pred_fallthru
    _
  // Predicated region
  $region14: #{_black_box_forward_impl.1} parent=0 // pred_check
    _
  $region15: #{_black_box_forward_impl.1} parent=0 // pred_check_branch
    %17 = sbr.rel (0) target = $region17
  $region16: #{_black_box_forward_impl.1} parent=0 // pred_region
    _
  $region17: #{_black_box_forward_impl.1} parent=0 // pred_fallthru
    _
  // Predicated region
  $region18: #{_black_box_forward_impl.1} parent=0 // pred_check
    _
  $region19: #{_black_box_forward_impl.1} parent=0 // pred_check_branch
    %19 = sbr.rel (0) target = $region21
  $region20: #{_black_box_forward_impl.1} parent=0 // pred_region
    _
  $region21: #{_black_box_forward_impl.1} parent=0 // pred_fallthru
    _
  %v20 = vld [vmem:[%s0] sm:$0x1]
  %v21 = vld [vmem:[%s0 + $0x1] sm:$0x1]
  %v22 = vld [vmem:[%s1] sm:$0xff]
  %v23 = vld [vmem:[%s1 + $0x8] sm:$0xff]
  %v24 = vld [vmem:[%s1 + $0x10] sm:$0xff]
  %v25 = vld [vmem:[%s1 + $0x18] sm:$0xff]
  %27 = vset.pattern.permute.xlu0 0
  %28 = vperm.xlu0 %27, %v22
  %v29 = vpop.permute.xlu0 %28
  %32 = vset.pattern.permute.xlu0 0
  %33 = vperm.xlu0 %32, %v23
  %v34 = vpop.permute.xlu0 %33
  %37 = vset.pattern.permute.xlu0 0
  %38 = vperm.xlu0 %37, %v24
  %v39 = vpop.permute.xlu0 %38
  %42 = vset.pattern.permute.xlu0 0
  %43 = vperm.xlu0 %42, %v25
  %v44 = vpop.permute.xlu0 %43
  %v46 = vlaneseq
  %v47 = vshrl.u32 %v46, 7
  %v48 = vsub.s32 0, %v47
  %v49 = vrot.slane %v20, %v48
  %v50 = vmul.f32 %v29, %v49
  %v51 = vmul.f32 %v34, %v49
  %v52 = vmul.f32 %v39, %v49
  %v53 = vmul.f32 %v44, %v49
  %54 = vset.pattern.permute.xlu0 1
  %55 = vperm.xlu0 %54, %v22
  %v56 = vpop.permute.xlu0 %55
  %58 = vset.pattern.permute.xlu0 1
  %59 = vperm.xlu0 %58, %v23
  %v60 = vpop.permute.xlu0 %59
  %62 = vset.pattern.permute.xlu0 1
  %63 = vperm.xlu0 %62, %v24
  %v64 = vpop.permute.xlu0 %63
  %66 = vset.pattern.permute.xlu0 1
  %67 = vperm.xlu0 %66, %v25
  %v68 = vpop.permute.xlu0 %67
  %v70 = vlaneseq
  %v71 = vshrl.u32 %v70, 7
  %v72 = vsub.s32 0, %v71
  %v73 = vrot.slane %v21, %v72
  %v74 = vmul.f32 %v56, %v73
  %v75 = vmul.f32 %v60, %v73
  %v76 = vmul.f32 %v64, %v73
  %v77 = vmul.f32 %v68, %v73
  %v78 = vadd.f32 %v50, %v74
  %v79 = vadd.f32 %v51, %v75
  %v80 = vadd.f32 %v52, %v76
  %v81 = vadd.f32 %v53, %v77
  %v82 = vld [vmem:[%s2] sm:$0xff]
  %v83 = vld [vmem:[%s2 + $0x8] sm:$0xff]
  %v84 = vld [vmem:[%s2 + $0x10] sm:$0xff]
  %v85 = vld [vmem:[%s2 + $0x18] sm:$0xff]
  %87 = vset.pattern.permute.xlu0 0
  %88 = vperm.xlu0 %87, %v82
  %v89 = vpop.permute.xlu0 %88
  %92 = vset.pattern.permute.xlu0 0
  %93 = vperm.xlu0 %92, %v83
  %v94 = vpop.permute.xlu0 %93
  %97 = vset.pattern.permute.xlu0 0
  %98 = vperm.xlu0 %97, %v84
  %v99 = vpop.permute.xlu0 %98
  %102 = vset.pattern.permute.xlu0 0
  %103 = vperm.xlu0 %102, %v85
  %v104 = vpop.permute.xlu0 %103
  %v106 = vadd.f32 %v78, %v89
  %v107 = vadd.f32 %v79, %v94
  %v108 = vadd.f32 %v80, %v99
  %v109 = vadd.f32 %v81, %v104
  %v110 = vtanh.pop %v106
  %v111 = vtanh.pop %v107
  %v112 = vtanh.pop %v108
  %v113 = vtanh.pop %v109
  %v114 = vld [vmem:[%s3] sm:$0x7]
  %v115 = vld [vmem:[%s4] sm:$0x7]
  %117 = vset.pattern.permute.xlu0 0
  %118 = vperm.xlu0 %117, %v115
  %v119 = vpop.permute.xlu0 %118
  %vm121 = vcmask 261120
  %v123 = vsel %vm121, %v114, 0
  %125 = vmatprep.subr.mxu0 0.0
  %126 = vmatpush1.msra.mxu0 %v110
  %127 = vmatprep.subr.mxu0 0.0
  %128 = vmatpush1.msra.mxu0 %v111
  %129 = vmatprep.subr.mxu0 0.0
  %130 = vmatpush1.msra.mxu0 %v112
  %131 = vmatprep.subr.mxu0 0.0
  %132 = vmatpush1.msra.mxu0 %v113
  %133 = vmatprep.subr.mxu0 0.0
  %134 = vmatpush1.msra.mxu0 0.0
  %135 = vmatprep.subr.mxu0 0.0
  %136 = vmatpush1.msra.mxu0 0.0
  %137 = vmatprep.subr.mxu0 0.0
  %138 = vmatpush1.msra.mxu0 0.0
  %139 = vmatprep.subr.mxu0 0.0
  %140 = vmatpush1.msra.mxu0 0.0
  %141 = vmatprep.subr.mxu0 0.0
  %142 = vmatpush1.msra.mxu0 0.0
  %143 = vmatprep.subr.mxu0 0.0
  %144 = vmatpush1.msra.mxu0 0.0
  %145 = vmatprep.subr.mxu0 0.0
  %146 = vmatpush1.msra.mxu0 0.0
  %147 = vmatprep.subr.mxu0 0.0
  %148 = vmatpush1.msra.mxu0 0.0
  %149 = vmatprep.subr.mxu0 0.0
  %150 = vmatpush1.msra.mxu0 0.0
  %151 = vmatprep.subr.mxu0 0.0
  %152 = vmatpush1.msra.mxu0 0.0
  %153 = vmatprep.subr.mxu0 0.0
  %154 = vmatpush1.msra.mxu0 0.0
  %155 = vmatprep.subr.mxu0 0.0
  %156 = vmatpush1.msra.mxu0 0.0
  %157 = vmatprep.subr.mxu0 0.0
  %158 = vmatpush1.msra.mxu0 0.0
  %159 = vmatprep.subr.mxu0 0.0
  %160 = vmatpush1.msra.mxu0 0.0
  %161 = vmatprep.subr.mxu0 0.0
  %162 = vmatpush1.msra.mxu0 0.0
  %163 = vmatprep.subr.mxu0 0.0
  %164 = vmatpush1.msra.mxu0 0.0
  %165 = vmatprep.subr.mxu0 0.0
  %166 = vmatpush1.msra.mxu0 0.0
  %167 = vmatprep.subr.mxu0 0.0
  %168 = vmatpush1.msra.mxu0 0.0
  %169 = vmatprep.subr.mxu0 0.0
  %170 = vmatpush1.msra.mxu0 0.0
  %171 = vmatprep.subr.mxu0 0.0
  %172 = vmatpush1.msra.mxu0 0.0
  %173 = vmatprep.subr.mxu0 0.0
  %174 = vmatpush1.msra.mxu0 0.0
  %175 = vmatprep.subr.mxu0 0.0
  %176 = vmatpush1.msra.mxu0 0.0
  %177 = vmatprep.subr.mxu0 0.0
  %178 = vmatpush1.msra.mxu0 0.0
  %179 = vmatprep.subr.mxu0 0.0
  %180 = vmatpush1.msra.mxu0 0.0
  %181 = vmatprep.subr.mxu0 0.0
  %182 = vmatpush1.msra.mxu0 0.0
  %183 = vmatprep.subr.mxu0 0.0
  %184 = vmatpush1.msra.mxu0 0.0
  %185 = vmatprep.subr.mxu0 0.0
  %186 = vmatpush1.msra.mxu0 0.0
  %187 = vmatprep.subr.mxu0 0.0
  %188 = vmatpush1.msra.mxu0 0.0
  %189 = vmatprep.mubr.f32.mxu0 0.0
  %190 = vmatmul.mubr.f32.gmra.mrb[0].mxu0 %v123
  %v191 = vpop.f32.mrb[0].mxu0
  %v192 = vadd.f32 %v119, %v191
  %v193 = vpop.f32.mrb[0].mxu0
  %194 = vdwg.mxu0
  %195 = vst [vmem:[%s5] sm:$0x7] %v192
  // Predicated region
  $region22: #{_black_box_forward_impl.1} parent=0 // pred_check
    _
  $region23: #{_black_box_forward_impl.1} parent=0 // pred_check_branch
    %197 = sbr.rel (0) target = $region25
  $region24: #{_black_box_forward_impl.1} parent=0 // pred_region
    _
  $region25: #{_black_box_forward_impl.1} parent=0 // pred_fallthru
    _
  // Predicated region
  $region26: #{_black_box_forward_impl.1} parent=0 // pred_check
    _
  $region27: #{_black_box_forward_impl.1} parent=0 // pred_check_branch
    %199 = sbr.rel (0) target = $region29
  $region28: #{_black_box_forward_impl.1} parent=0 // pred_region
    _
  $region29: #{_black_box_forward_impl.1} parent=0 // pred_fallthru
    _

</llo_original>
